<compile_context>
chip_gen: v6e
topology: v6e:2x2x1
jax: 0.10.0
libtpu: 0.0.40
codegen_flags: <defaults>
</compile_context>

<pallas_src>
import functools

import jax
import jax.numpy as jnp
from jax.experimental import pallas as pl
from jax.experimental.pallas import tpu as pltpu


def _round_up(x, m):
    return (x + m - 1) // m * m


def _cdiv(a, b):
    return (a + b - 1) // b


_SUBLANE_MULTIPLE = {4: 8, 2: 16, 1: 32}  # bytes-per-elem -> sublane granule


def _fused_leaky_relu_kernel(x_ref, b_ref, o_ref, *, negative_slope, scale):
    x = x_ref[...].astype(jnp.float32)              # (tm, tl)
    b = b_ref[...].astype(jnp.float32)              # (tm, 1) or (1, tl) -> broadcast
    y = x + b
    # scale folded into the select: y>=0 -> scale*y, else scale*negative_slope*y
    o_ref[...] = (jnp.where(y >= 0.0, scale, scale * negative_slope) * y
                  ).astype(o_ref.dtype)


@functools.partial(jax.jit, static_argnums=(2, 3),
                   static_argnames=("block_rows", "block_cols"))
def fused_leaky_relu(x, bias, negative_slope=0.2, scale=2.0 ** 0.5, *,
                     block_rows=512, block_cols=2048):
    """x: (N, C, H, W) NCHW; bias: (channel,) with channel >= C."""
    N, C, H, W = x.shape
    HW = H * W

    # Layout selection (both are zero-cost views of contiguous NCHW memory).
    small_spatial = HW < 512
    if small_spatial:
        # (N, C*H*W): keeps the lane axis a large multiple of 128 for low-res
        # GAN stages; bias becomes a per-lane row broadcast over rows.
        M, L = N, C * HW
        x2 = x.reshape(M, L)
        b2 = jnp.repeat(bias[:C].astype(x.dtype), HW).reshape(1, L)
    else:
        # (N*C, H*W): bias becomes a per-row column broadcast over lanes.
        M, L = N * C, HW
        x2 = x.reshape(M, L)
        b2 = jnp.tile(bias[:C].astype(x.dtype), N).reshape(M, 1)

    # Tile selection: (sublane, 128)-aligned, as large as useful; NO padding of
    # the arrays -- Pallas masks the ragged boundary blocks.
    sub = _SUBLANE_MULTIPLE.get(jnp.dtype(x.dtype).itemsize, 8)
    tm = min(block_rows, _round_up(M, sub))
    tl = min(block_cols, _round_up(L, 128))
    # v7x has 2 TensorCores sharded over "parallel" grid axes: if everything
    # fits in a single block, split L so there are at least 2 blocks.
    if _cdiv(M, tm) == 1 and _cdiv(L, tl) == 1 and L > 128:
        tl = max(128, _round_up(_cdiv(L, 2), 128))

    # Row axis outer, L innermost: the bias block index (i, 0) / (0, j) stays
    # cheap and the (tm, 1) bias tile is not re-fetched every inner step.
    grid = (_cdiv(M, tm), _cdiv(L, tl))

    if small_spatial:
        b_spec = pl.BlockSpec((1, tl), lambda i, j: (0, j))
    else:
        b_spec = pl.BlockSpec((tm, 1), lambda i, j: (i, 0))

    out = pl.pallas_call(
        functools.partial(_fused_leaky_relu_kernel,
                          negative_slope=float(negative_slope),
                          scale=float(scale)),
        out_shape=jax.ShapeDtypeStruct((M, L), x.dtype),
        grid_spec=pltpu.PrefetchScalarGridSpec(
            num_scalar_prefetch=0,
            grid=grid,
            in_specs=[
                pl.BlockSpec((tm, tl), lambda i, j: (i, j)),
                b_spec,
            ],
            out_specs=pl.BlockSpec((tm, tl), lambda i, j: (i, j)),
        ),
        compiler_params=pltpu.CompilerParams(
            dimension_semantics=("parallel", "parallel"),
            vmem_limit_bytes=32 * 1024 * 1024),
    )(x2, b2)

    return out.reshape(N, C, H, W)


def _reference(x, bias, negative_slope, scale):
    C = x.shape[1]
    xb = x + bias[:C].reshape(1, C, 1, 1)
    return scale * jnp.where(xb >= 0.0, xb, negative_slope * xb)


if __name__ == "__main__":
    key = jax.random.PRNGKey(0)
    negative_slope, scale = 0.2, 2.0 ** 0.5

    # Test 1: the module's canonical small shape -> small-spatial (N, C*H*W) path.
    k1, k2, k3, k4 = jax.random.split(key, 4)
    N, C, H, W = 2, 4, 16, 16
    x1 = jax.random.normal(k1, (N, C, H, W), jnp.float32)
    b1 = 0.1 * jax.random.normal(k2, (C,), jnp.float32)       # channel == C
    y1 = jax.block_until_ready(fused_leaky_relu(x1, b1, negative_slope, scale))
    r1 = _reference(x1, b1, negative_slope, scale)
    assert y1.shape == (N, C, H, W)
    assert bool(jnp.all(jnp.isfinite(y1)))
    assert bool(jnp.allclose(y1, r1, atol=1e-5, rtol=1e-5)), \
        float(jnp.max(jnp.abs(y1 - r1)))

    # Test 2: non-divisible shape + channel > C -> large-spatial path with
    # ragged (masked) boundary blocks and the bias[:C] slice exercised.
    N2, C2, H2, W2 = 2, 3, 24, 40
    x2 = jax.random.normal(k3, (N2, C2, H2, W2), jnp.float32)
    b2 = 0.1 * jax.random.normal(k4, (8,), jnp.float32)        # channel=8 > C=3
    y2 = jax.block_until_ready(fused_leaky_relu(x2, b2, negative_slope, scale))
    r2 = _reference(x2, b2, negative_slope, scale)
    assert y2.shape == (N2, C2, H2, W2)
    assert bool(jnp.all(jnp.isfinite(y2)))
    assert bool(jnp.allclose(y2, r2, atol=1e-5, rtol=1e-5)), \
        float(jnp.max(jnp.abs(y2 - r2)))

    print("KERNEL_OK")
</pallas_src>

<mosaic_0001>
module attributes {stable_mosaic.version = 11 : i64} {
  func.func @_fused_leaky_relu_kernel(%arg0: i32, %arg1: i32, %arg2: memref<8x512xf32, #tpu.memory_space<vmem>>, %arg3: memref<1x512xf32, #tpu.memory_space<vmem>>, %arg4: memref<8x512xf32, #tpu.memory_space<vmem>>) attributes {dimension_semantics = [#tpu.dimension_semantics<parallel>, #tpu.dimension_semantics<parallel>], iteration_bounds = array<i64: 1, 2>, scalar_prefetch = 0 : i64, scratch_operands = 0 : i64, tpu.core_type = #tpu.core_type<tc>, window_params = [{transform_indices = @transform_0, window_bounds = array<i64: 8, 512>}, {transform_indices = @transform_1, window_bounds = array<i64: 1, 512>}, {transform_indices = @transform_2, window_bounds = array<i64: 8, 512>}]} {
    %c0 = arith.constant 0 : index
    %c0_0 = arith.constant 0 : index
    %0 = vector.load %arg2[%c0, %c0_0] : memref<8x512xf32, #tpu.memory_space<vmem>>, vector<8x512xf32>
    %c0_1 = arith.constant 0 : index
    %c0_2 = arith.constant 0 : index
    %1 = vector.load %arg3[%c0_1, %c0_2] : memref<1x512xf32, #tpu.memory_space<vmem>>, vector<1x512xf32>
    %2 = vector.broadcast %1 : vector<1x512xf32> to vector<8x512xf32>
    %3 = arith.addf %0, %2 : vector<8x512xf32>
    %cst = arith.constant 0.000000e+00 : f32
    %4 = vector.broadcast %cst : f32 to vector<8x512xf32>
    %5 = arith.cmpf oge, %3, %4 : vector<8x512xf32>
    %cst_3 = arith.constant 1.41421354 : f32
    %cst_4 = arith.constant 0.282842726 : f32
    %6 = vector.broadcast %cst_3 : f32 to vector<8x512xf32>
    %7 = vector.broadcast %cst_4 : f32 to vector<8x512xf32>
    %8 = arith.select %5, %6, %7 : vector<8x512xi1>, vector<8x512xf32>
    %9 = arith.mulf %8, %3 : vector<8x512xf32>
    %c0_5 = arith.constant 0 : index
    %c0_6 = arith.constant 0 : index
    %10 = vector.load %arg4[%c0_5, %c0_6] : memref<8x512xf32, #tpu.memory_space<vmem>>, vector<8x512xf32>
    tpu.vector_store %arg4[%c0_5, %c0_6], %9 {strides = array<i32>} : memref<8x512xf32, #tpu.memory_space<vmem>>, vector<8x512xf32>,
    return
  }
  func.func @transform_0(%arg0: i32, %arg1: i32) -> (i32, i32) {
    %c0_i32 = arith.constant 0 : i32
    return %arg0, %arg1 : i32, i32
  }
  func.func @transform_1(%arg0: i32, %arg1: i32) -> (i32, i32) {
    %c0_i32 = arith.constant 0 : i32
    %c0_i32_0 = arith.constant 0 : i32
    return %c0_i32, %arg1 : i32, i32
  }
  func.func @transform_2(%arg0: i32, %arg1: i32) -> (i32, i32) {
    %c0_i32 = arith.constant 0 : i32
    return %arg0, %arg1 : i32, i32
  }
}

</mosaic_0001>

<llo_original>
// kernel: fused_leaky_relu.1
$region0: #{fused_leaky_relu.1}
  #allocation0 [shape = 'u32[]', space=smem, size = 0x4, offset = 0x4, fixed_abs, tag = 'smem constant byte address 0x4 - core index']
  #allocation1 [shape = 'u32[144,128]{1,0:T(1,128)}', space=vmem, size = 0x12000, scoped, tag = 'internal scratch']
  %s0 = inlined_call_operand.vmem [shape: f32[2,1024], index: 0, kind: input, shape index: {}]
  %s1 = inlined_call_operand.vmem [shape: f32[1,1024], index: 1, kind: input, shape index: {}]
  %s2 = inlined_call_operand.vmem [shape: f32[2,1024], index: 2, kind: output, shape index: {}]
  %s3 = sld [smem:[#allocation0]]
  $region113: #{fused_leaky_relu.1} parent=0
    _
  %s5 = ssub.s32 1, %s3
  %s6 = scalar_select 0, %s5, %s3
  $region1: #{fused_leaky_relu.1} parent=0
    #allocation2 [shape = 'u8[32768]{0}', space=vmem, size = 0x8000, scoped, tag = 'input window, operand 0']
    #allocation3 [shape = 'u8[32768]{0}', space=vmem, size = 0x8000, scoped, tag = 'output window, operand 0']
    loop: start=0, step=1, limit=4
    $region2: #{fused_leaky_relu.1} parent=1 // loop_pre_header
      _
    $region3: #{fused_leaky_relu.1} parent=1 // loop_header
      %s8 = sphi 0, %s12
      %p9 = scmp.ge.s32.totalorder %s8, 4
      %s15 = sphi 0, %s27
      %s16 = sphi 0, %s23
      %s17 = sphi 0, %s15
      %s18 = sphi 0, %s16
      %s19 = sphi 0, %s17
      %s20 = sphi 0, %s18
      %s32 = sphi 0, %s34
      %s35 = sphi 0, %s32
      %s36 = sphi 0, %s35
      %s52 = sphi 0, %s36
      %s58 = sphi 0, %s60
      %s61 = sphi 0, %s58
      %s62 = sphi 0, %s61
      %s78 = sphi 0, %s62
      %s86 = sphi 0, %s88
      %s89 = sphi 0, %s86
      %s90 = sphi 0, %s89
      %s106 = sphi 0, %s90
    $region4: #{fused_leaky_relu.1} parent=1 // loop_header_branch
      %11 = sbr.rel (%p9) target = $region8
    $region5: #{fused_leaky_relu.1} parent=1 // loop_body
      %s13 = ssub.s32 %s8, 1
      %s14 = ssub.s32 %s8, 2
      %s21 = sadd.s32 1, %s16
      %p22 = scmp.ge.s32.totalorder %s21, 2
      %s23 = scalar_select %p22, 0, %s21
      %s24 = sadd.s32 1, %s15
      %s25 = scalar_select %p22, %s24, %s15
      %p26 = scmp.ge.s32.totalorder %s25, 1
      %s27 = scalar_select %p26, 0, %s25
      %s28 = ssub.s32 %s15, %s27
      %s29 = ssub.s32 %s16, %s23
      %s30 = sor.u32 %s28, %s29
      %p31 = scmp.eq.s32.totalorder %s30, 0
      %s33 = sadd.s32 %s32, 1
      %s34 = scalar_select %p31, %s32, %s33
      %p37 = pneg %p31
      %p38 = scmp.eq.s32.totalorder %s8, 1
      %p39 = por %p37, %p38
      %p40 = scmp.ne.s32.totalorder %s32, %s35
      %p41 = scmp.eq.s32.totalorder %s8, 0
      %p42 = por %p40, %p41
      %p43 = scmp.ne.s32.totalorder %s32, %s35
      %p44 = scmp.eq.s32.totalorder %s13, 1
      %p45 = por %p43, %p44
      %p46 = scmp.ne.s32.totalorder %s35, %s36
      %p47 = scmp.eq.s32.totalorder %s13, 0
      %p48 = por %p46, %p47
      %p49 = scmp.ne.s32.totalorder %s35, %s36
      %p50 = scmp.eq.s32.totalorder %s14, 1
      %p51 = por %p49, %p50
      %p53 = scmp.ne.s32.totalorder %s36, %s52
      %p54 = scmp.eq.s32.totalorder %s14, 0
      %p55 = por %p53, %p54
      %s56 = ssub.s32 %s16, %s23
      %p57 = scmp.eq.s32.totalorder %s56, 0
      %s59 = sadd.s32 %s58, 1
      %s60 = scalar_select %p57, %s58, %s59
      %p63 = pneg %p57
      %p64 = scmp.eq.s32.totalorder %s8, 1
      %p65 = por %p63, %p64
      %p66 = scmp.ne.s32.totalorder %s58, %s61
      %p67 = scmp.eq.s32.totalorder %s8, 0
      %p68 = por %p66, %p67
      %p69 = scmp.ne.s32.totalorder %s58, %s61
      %p70 = scmp.eq.s32.totalorder %s13, 1
      %p71 = por %p69, %p70
      %p72 = scmp.ne.s32.totalorder %s61, %s62
      %p73 = scmp.eq.s32.totalorder %s13, 0
      %p74 = por %p72, %p73
      %p75 = scmp.ne.s32.totalorder %s61, %s62
      %p76 = scmp.eq.s32.totalorder %s14, 1
      %p77 = por %p75, %p76
      %p79 = scmp.ne.s32.totalorder %s62, %s78
      %p80 = scmp.eq.s32.totalorder %s14, 0
      %p81 = por %p79, %p80
      %s82 = ssub.s32 %s15, %s27
      %s83 = ssub.s32 %s16, %s23
      %s84 = sor.u32 %s82, %s83
      %p85 = scmp.eq.s32.totalorder %s84, 0
      %s87 = sadd.s32 %s86, 1
      %s88 = scalar_select %p85, %s86, %s87
      %p91 = pneg %p85
      %p92 = scmp.eq.s32.totalorder %s8, 1
      %p93 = por %p91, %p92
      %p94 = scmp.ne.s32.totalorder %s86, %s89
      %p95 = scmp.eq.s32.totalorder %s8, 0
      %p96 = por %p94, %p95
      %p97 = scmp.ne.s32.totalorder %s86, %s89
      %p98 = scmp.eq.s32.totalorder %s13, 1
      %p99 = por %p97, %p98
      %p100 = scmp.ne.s32.totalorder %s89, %s90
      %p101 = scmp.eq.s32.totalorder %s13, 0
      %p102 = por %p100, %p101
      %p103 = scmp.ne.s32.totalorder %s89, %s90
      %p104 = scmp.eq.s32.totalorder %s14, 1
      %p105 = por %p103, %p104
      %p107 = scmp.ne.s32.totalorder %s90, %s106
      %p108 = scmp.eq.s32.totalorder %s14, 0
      %p109 = por %p107, %p108
      %p110 = scmp.le.s32.totalorder 1, %s8
      %p111 = scmp.lt.s32.totalorder %s8, 3
      %p112 = pnand %p110, %p111
      %p113 = pneg %p112
      // Predicated region
      $region9: #{fused_leaky_relu.1} parent=5 // pred_check
        _
      $region10: #{fused_leaky_relu.1} parent=5 // pred_check_branch
        %115 = sbr.rel (%p112) target = $region12
      $region11: #{fused_leaky_relu.1} parent=5 // pred_region
        %s116 = ssub.s32 %s8, 1
      $region12: #{fused_leaky_relu.1} parent=5 // pred_fallthru
        _
      %p117 = scmp.lt.s32.totalorder %s8, 2
      // Predicated region
      $region13: #{fused_leaky_relu.1} parent=5 // pred_check
        %p118 = pneg %p117
      $region14: #{fused_leaky_relu.1} parent=5 // pred_check_branch
        %120 = sbr.rel (%p118) target = $region16
      $region15: #{fused_leaky_relu.1} parent=5 // pred_region
        // Predicated region
        $region17: #{fused_leaky_relu.1} parent=15 // pred_check
          %p121 = pneg %p42
        $region18: #{fused_leaky_relu.1} parent=15 // pred_check_branch
          %123 = sbr.rel (%p121) target = $region20
        $region19: #{fused_leaky_relu.1} parent=15 // pred_region
          %s124 = sand.u32 %s32, 1
          %s125 = sand.u32 %s32, 1
          %s126 = smul.addr %s125, 32
          %s127 = scalar_lea.vmem [#allocation2], %s126
          %s128 = smul.u32 4, %s15
          %s129 = smul.u32 4, %s16
          %s130 = ssub.s32 1, %s128
          %s131 = smul.u32 32, %s130
          %s132 = smul.u32 %s131, 4
          %p133 = scmp.ne.s32.totalorder 0, %s132
          %s134 = smul.addr %s128, 8
          %s135 = sadd.s32 %s129, %s134
          %s136 = smul.addr %s135, 2
          %s137 = scalar_lea.vmem %s0, %s136
          // Predicated region
          $region21: #{fused_leaky_relu.1} parent=19 // pred_check
            %p138 = pneg %p133
          $region22: #{fused_leaky_relu.1} parent=19 // pred_check_branch
            %140 = sbr.rel (%p138) target = $region24
          $region23: #{fused_leaky_relu.1} parent=19 // pred_region
            // Predicated region
            $region25: #{fused_leaky_relu.1} parent=23 // pred_check
              _
            $region26: #{fused_leaky_relu.1} parent=23 // pred_check_branch
              %142 = sbr.rel (0) target = $region28
            $region27: #{fused_leaky_relu.1} parent=23 // pred_region
              // Predicated region
              $region40: #{fused_leaky_relu.1} parent=27 // pred_check
                _
              $region41: #{fused_leaky_relu.1} parent=27 // pred_check_branch
                %166 = sbr.rel (0) target = $region43
              $region42: #{fused_leaky_relu.1} parent=27 // pred_region
                // While loop
                $region44: #{fused_leaky_relu.1} parent=42 // loop_pre_header
                  _
                $region45: #{fused_leaky_relu.1} parent=42 // loop_header
                  %s168 = sphi 0, %s170
                  %p169 = scmp.ge.s32.totalorder %s168, %s130
                  %s173 = sphi 0, %s180
                  %s174 = sphi %s137, %s183
                  %s175 = sphi %s127, %s184
                $region46: #{fused_leaky_relu.1} parent=42 // loop_header_branch
                  %172 = sbr.rel (%p169) target = $region50
                $region47: #{fused_leaky_relu.1} parent=42 // loop_body
                  %v176 = vld [vmem:[%s174] sm:$0xff]
                  %177 = vst [vmem:[%s175] sm:$0xff] %v176
                  %s178 = sadd.s32 1, %s173
                  %p179 = scmp.ge.s32.totalorder %s178, %s130
                  %s180 = scalar_select %p179, 0, %s178
                  %s181 = smul.u32 %s180, 16
                  %s182 = smul.u32 %s180, 8
                  %s183 = scalar_lea.vmem %s137, %s181
                  %s184 = scalar_lea.vmem %s127, %s182 [#allocation2]
                $region48: #{fused_leaky_relu.1} parent=42 // loop_footer
                  %s170 = sadd.s32 %s168, 1
                $region49: #{fused_leaky_relu.1} parent=42 // loop_footer_branch
                  %167 = sbr.rel target = $region45
                $region50: #{fused_leaky_relu.1} parent=42 // loop_exit
                  _
              $region43: #{fused_leaky_relu.1} parent=27 // pred_fallthru
                _
              // Predicated region
              $region51: #{fused_leaky_relu.1} parent=27 // pred_check
                _
              $region52: #{fused_leaky_relu.1} parent=27 // pred_check_branch
                %186 = sbr.rel target = $region54
              $region53: #{fused_leaky_relu.1} parent=27 // pred_region
                _
              $region54: #{fused_leaky_relu.1} parent=27 // pred_fallthru
                _
            $region28: #{fused_leaky_relu.1} parent=23 // pred_fallthru
              _
            // Predicated region
            $region29: #{fused_leaky_relu.1} parent=23 // pred_check
              _
            $region30: #{fused_leaky_relu.1} parent=23 // pred_check_branch
              %144 = sbr.rel target = $region32
            $region31: #{fused_leaky_relu.1} parent=23 // pred_region
              %s146 = ssub.s32 256, 1
              // While loop
              $region33: #{fused_leaky_relu.1} parent=31 // loop_pre_header
                _
              $region34: #{fused_leaky_relu.1} parent=31 // loop_header
                %s148 = sphi 0, %s150
                %p149 = scmp.ge.s32.totalorder %s148, %s130
                %s153 = sphi 0, %s160
                %s154 = sphi %s137, %s163
                %s155 = sphi %s127, %s164
              $region35: #{fused_leaky_relu.1} parent=31 // loop_header_branch
                %152 = sbr.rel (%p149) target = $region39
              $region36: #{fused_leaky_relu.1} parent=31 // loop_body
                %v156 = vld [vmem:[%s154] sm:%s146]
                %157 = vst [vmem:[%s155] sm:%s146] %v156
                %s158 = sadd.s32 1, %s153
                %p159 = scmp.ge.s32.totalorder %s158, %s130
                %s160 = scalar_select %p159, 0, %s158
                %s161 = smul.u32 %s160, 16
                %s162 = smul.u32 %s160, 8
                %s163 = scalar_lea.vmem %s137, %s161
                %s164 = scalar_lea.vmem %s127, %s162 [#allocation2]
              $region37: #{fused_leaky_relu.1} parent=31 // loop_footer
                %s150 = sadd.s32 %s148, 1
              $region38: #{fused_leaky_relu.1} parent=31 // loop_footer_branch
                %147 = sbr.rel target = $region34
              $region39: #{fused_leaky_relu.1} parent=31 // loop_exit
                _
            $region32: #{fused_leaky_relu.1} parent=23 // pred_fallthru
              _
          $region24: #{fused_leaky_relu.1} parent=19 // pred_fallthru
            _
          %187 = vnop
        $region20: #{fused_leaky_relu.1} parent=15 // pred_fallthru
          _
        // Predicated region
        $region55: #{fused_leaky_relu.1} parent=15 // pred_check
          %p188 = pneg %p68
        $region56: #{fused_leaky_relu.1} parent=15 // pred_check_branch
          %190 = sbr.rel (%p188) target = $region58
        $region57: #{fused_leaky_relu.1} parent=15 // pred_region
          %s191 = smul.u32 4, %s16
          %p192 = scmp.lt.s32.totalorder %s191, 7
          %s193 = scalar_select %p192, %s191, 7
          %s194 = scalar_lea.vmem %s1, %s193
          %s195 = smul.u32 4, %s16
        $region58: #{fused_leaky_relu.1} parent=15 // pred_fallthru
          _
      $region16: #{fused_leaky_relu.1} parent=5 // pred_fallthru
        _
      %p196 = scmp.le.s32.totalorder 1, %s8
      %p197 = scmp.lt.s32.totalorder %s8, 3
      %p198 = pnand %p196, %p197
      %p199 = pneg %p198
      // Predicated region
      $region59: #{fused_leaky_relu.1} parent=5 // pred_check
        _
      $region60: #{fused_leaky_relu.1} parent=5 // pred_check_branch
        %201 = sbr.rel (%p198) target = $region62
      $region61: #{fused_leaky_relu.1} parent=5 // pred_region
        %s202 = ssub.s32 %s8, 1
        %s203 = sand.u32 %s35, 1
        %s204 = sand.u32 %s35, 1
        %s205 = smul.addr %s204, 32
        %s206 = scalar_lea.vmem [#allocation2], %s205
        // Predicated region
        $region63: #{fused_leaky_relu.1} parent=61 // pred_check
          %p207 = pneg %p48
        $region64: #{fused_leaky_relu.1} parent=61 // pred_check_branch
          %209 = sbr.rel (%p207) target = $region66
        $region65: #{fused_leaky_relu.1} parent=61 // pred_region
          _
        $region66: #{fused_leaky_relu.1} parent=61 // pred_fallthru
          _
        %s210 = sand.u32 %s35, 1
        %s211 = sand.u32 %s35, 1
        %s212 = smul.addr %s211, 32
        %s213 = scalar_lea.vmem [#allocation2], %s212
        %p214 = pneg %p48
        %p215 = pneg %p45
        %s216 = smul.u32 4, %s18
        %p217 = scmp.lt.s32.totalorder %s216, 7
        %s218 = scalar_select %p217, %s216, 7
        %s219 = scalar_lea.vmem %s1, %s218
        %p220 = pneg %p74
        %p221 = pneg %p71
        %p222 = pneg %p102
        %p223 = pneg %p99
        %s224 = sand.u32 %s89, 1
        %s225 = sand.u32 %s89, 1
        %s226 = smul.addr %s225, 32
        %s227 = scalar_lea.vmem [#allocation3], %s226
        %s228 = smul.u32 4, %s17
        %s229 = smul.u32 4, %s18
        %s230 = ssub.s32 1, %s228
        %s231 = smul.u32 32, %s230
        %s232 = smul.u32 %s231, 4
        %s233 = smul.u32 4, %s18
        %p234 = scmp.lt.s32.totalorder %s233, 7
        %s235 = scalar_select %p234, %s233, 7
        %s236 = scalar_lea.vmem %s1, %s235
        %s237 = smul.u32 4, %s18
        %s238 = smul.u32 4, %s17
        %s239 = smul.u32 4, %s18
        %s240 = ssub.s32 1, %s238
        %s241 = smul.u32 32, %s240
        %s242 = smul.u32 %s241, 4
        %v243 = vld [vmem:[%s206] sm:$0xff]
        %v244 = vld [vmem:[%s206 + $0x8] sm:$0xff]
        %v245 = vld [vmem:[%s206 + $0x10] sm:$0xff]
        %v246 = vld [vmem:[%s206 + $0x18] sm:$0xff]
        %v247 = vld [vmem:[%s236] sm:$0xf]
        %v249 = vlaneseq
        %v250 = vshrl.u32 %v249, 7
        %v251 = vsub.s32 0, %v250
        %v252 = vrot.slane %v247, %v251
        %v253 = vlaneseq
        %v254 = vshrl.u32 %v253, 7
        %v255 = vsub.s32 1, %v254
        %v256 = vrot.slane %v247, %v255
        %v257 = vlaneseq
        %v258 = vshrl.u32 %v257, 7
        %v259 = vsub.s32 2, %v258
        %v260 = vrot.slane %v247, %v259
        %v261 = vlaneseq
        %v262 = vshrl.u32 %v261, 7
        %v263 = vsub.s32 3, %v262
        %v264 = vrot.slane %v247, %v263
        %v265 = vcombine.low %v252, %v256
        %v266 = vcombine.high %v252, %v256
        %v267 = vcombine.low %v260, %v264
        %v268 = vcombine.high %v260, %v264
        %v270 = vunpack.c.l.s4 1983009808
        %v271 = vunpack.c.0.s8 %v270
        %v272 = vlaneseq
        %v273 = vshrl.u32 %v272, 7
        %v274 = vsub.s32 %v271, %v273
        %v275 = vrot.slane %v265, %v274
        %v277 = vunpack.c.l.s4 1983009808
        %v278 = vunpack.c.0.s8 %v277
        %v279 = vlaneseq
        %v280 = vshrl.u32 %v279, 7
        %v281 = vsub.s32 %v278, %v280
        %v282 = vrot.slane %v266, %v281
        %v284 = vunpack.c.l.s4 1983009808
        %v285 = vunpack.c.0.s8 %v284
        %v286 = vlaneseq
        %v287 = vshrl.u32 %v286, 7
        %v288 = vsub.s32 %v285, %v287
        %v289 = vrot.slane %v267, %v288
        %v291 = vunpack.c.l.s4 1983009808
        %v292 = vunpack.c.0.s8 %v291
        %v293 = vlaneseq
        %v294 = vshrl.u32 %v293, 7
        %v295 = vsub.s32 %v292, %v294
        %v296 = vrot.slane %v268, %v295
        %v297 = vcombine.low %v275, %v289
        %v298 = vcombine.high %v275, %v289
        %v299 = vcombine.low %v282, %v296
        %v300 = vcombine.high %v282, %v296
        %v305 = vadd.f32 %v243, %v297
        %v306 = vadd.f32 %v244, %v298
        %v307 = vadd.f32 %v245, %v299
        %v308 = vadd.f32 %v246, %v300
        %vm309 = vcmp.ge.f32.partialorder %v305, 0.0
        %vm310 = vcmp.ge.f32.partialorder %v306, 0.0
        %vm311 = vcmp.ge.f32.partialorder %v307, 0.0
        %vm312 = vcmp.ge.f32.partialorder %v308, 0.0
        %v313 = vsel %vm309, 1.4142135, 0.28284273
        %v314 = vsel %vm310, 1.4142135, 0.28284273
        %v315 = vsel %vm311, 1.4142135, 0.28284273
        %v316 = vsel %vm312, 1.4142135, 0.28284273
        %v317 = vmul.f32 %v313, %v305
        %v318 = vmul.f32 %v314, %v306
        %v319 = vmul.f32 %v315, %v307
        %v320 = vmul.f32 %v316, %v308
        %321 = vst [vmem:[%s227] sm:$0xff] %v317
        %322 = vst [vmem:[%s227 + $0x8] sm:$0xff] %v318
        %323 = vst [vmem:[%s227 + $0x10] sm:$0xff] %v319
        %324 = vst [vmem:[%s227 + $0x18] sm:$0xff] %v320
        %s325 = sand.u32 %s89, 1
        %s326 = sand.u32 %s89, 1
        %s327 = smul.addr %s326, 32
        %s328 = scalar_lea.vmem [#allocation3], %s327
        // Predicated region
        $region67: #{fused_leaky_relu.1} parent=61 // pred_check
          %p329 = pneg %p99
        $region68: #{fused_leaky_relu.1} parent=61 // pred_check_branch
          %331 = sbr.rel (%p329) target = $region70
        $region69: #{fused_leaky_relu.1} parent=61 // pred_region
          %s332 = smul.u32 4, %s17
          %s333 = smul.u32 4, %s18
          %s334 = ssub.s32 1, %s332
          %s335 = smul.u32 32, %s334
          %s336 = smul.u32 %s335, 4
          %p337 = scmp.ne.s32.totalorder 0, %s336
          %s338 = smul.addr %s332, 8
          %s339 = sadd.s32 %s333, %s338
          %s340 = smul.addr %s339, 2
          %s341 = scalar_lea.vmem %s2, %s340
          // Predicated region
          $region71: #{fused_leaky_relu.1} parent=69 // pred_check
            %p342 = pneg %p337
          $region72: #{fused_leaky_relu.1} parent=69 // pred_check_branch
            %344 = sbr.rel (%p342) target = $region74
          $region73: #{fused_leaky_relu.1} parent=69 // pred_region
            // Predicated region
            $region75: #{fused_leaky_relu.1} parent=73 // pred_check
              _
            $region76: #{fused_leaky_relu.1} parent=73 // pred_check_branch
              %346 = sbr.rel (0) target = $region78
            $region77: #{fused_leaky_relu.1} parent=73 // pred_region
              // Predicated region
              $region90: #{fused_leaky_relu.1} parent=77 // pred_check
                _
              $region91: #{fused_leaky_relu.1} parent=77 // pred_check_branch
                %370 = sbr.rel (0) target = $region93
              $region92: #{fused_leaky_relu.1} parent=77 // pred_region
                // While loop
                $region94: #{fused_leaky_relu.1} parent=92 // loop_pre_header
                  _
                $region95: #{fused_leaky_relu.1} parent=92 // loop_header
                  %s372 = sphi 0, %s374
                  %p373 = scmp.ge.s32.totalorder %s372, %s334
                  %s377 = sphi 0, %s384
                  %s378 = sphi %s328, %s387
                  %s379 = sphi %s341, %s388
                $region96: #{fused_leaky_relu.1} parent=92 // loop_header_branch
                  %376 = sbr.rel (%p373) target = $region100
                $region97: #{fused_leaky_relu.1} parent=92 // loop_body
                  %v380 = vld [vmem:[%s378] sm:$0xff]
                  %381 = vst [vmem:[%s379] sm:$0xff] %v380
                  %s382 = sadd.s32 1, %s377
                  %p383 = scmp.ge.s32.totalorder %s382, %s334
                  %s384 = scalar_select %p383, 0, %s382
                  %s385 = smul.u32 %s384, 8
                  %s386 = smul.u32 %s384, 16
                  %s387 = scalar_lea.vmem %s328, %s385 [#allocation3]
                  %s388 = scalar_lea.vmem %s341, %s386
                $region98: #{fused_leaky_relu.1} parent=92 // loop_footer
                  %s374 = sadd.s32 %s372, 1
                $region99: #{fused_leaky_relu.1} parent=92 // loop_footer_branch
                  %371 = sbr.rel target = $region95
                $region100: #{fused_leaky_relu.1} parent=92 // loop_exit
                  _
              $region93: #{fused_leaky_relu.1} parent=77 // pred_fallthru
                _
              // Predicated region
              $region101: #{fused_leaky_relu.1} parent=77 // pred_check
                _
              $region102: #{fused_leaky_relu.1} parent=77 // pred_check_branch
                %390 = sbr.rel target = $region104
              $region103: #{fused_leaky_relu.1} parent=77 // pred_region
                _
              $region104: #{fused_leaky_relu.1} parent=77 // pred_fallthru
                _
            $region78: #{fused_leaky_relu.1} parent=73 // pred_fallthru
              _
            // Predicated region
            $region79: #{fused_leaky_relu.1} parent=73 // pred_check
              _
            $region80: #{fused_leaky_relu.1} parent=73 // pred_check_branch
              %348 = sbr.rel target = $region82
            $region81: #{fused_leaky_relu.1} parent=73 // pred_region
              %s350 = ssub.s32 256, 1
              // While loop
              $region83: #{fused_leaky_relu.1} parent=81 // loop_pre_header
                _
              $region84: #{fused_leaky_relu.1} parent=81 // loop_header
                %s352 = sphi 0, %s354
                %p353 = scmp.ge.s32.totalorder %s352, %s334
                %s357 = sphi 0, %s364
                %s358 = sphi %s328, %s367
                %s359 = sphi %s341, %s368
              $region85: #{fused_leaky_relu.1} parent=81 // loop_header_branch
                %356 = sbr.rel (%p353) target = $region89
              $region86: #{fused_leaky_relu.1} parent=81 // loop_body
                %v360 = vld [vmem:[%s358] sm:%s350]
                %361 = vst [vmem:[%s359] sm:%s350] %v360
                %s362 = sadd.s32 1, %s357
                %p363 = scmp.ge.s32.totalorder %s362, %s334
                %s364 = scalar_select %p363, 0, %s362
                %s365 = smul.u32 %s364, 8
                %s366 = smul.u32 %s364, 16
                %s367 = scalar_lea.vmem %s328, %s365 [#allocation3]
                %s368 = scalar_lea.vmem %s341, %s366
              $region87: #{fused_leaky_relu.1} parent=81 // loop_footer
                %s354 = sadd.s32 %s352, 1
              $region88: #{fused_leaky_relu.1} parent=81 // loop_footer_branch
                %351 = sbr.rel target = $region84
              $region89: #{fused_leaky_relu.1} parent=81 // loop_exit
                _
            $region82: #{fused_leaky_relu.1} parent=73 // pred_fallthru
              _
          $region74: #{fused_leaky_relu.1} parent=69 // pred_fallthru
            _
          %391 = vnop
        $region70: #{fused_leaky_relu.1} parent=61 // pred_fallthru
          _
      $region62: #{fused_leaky_relu.1} parent=5 // pred_fallthru
        _
      %p392 = scmp.le.s32.totalorder 2, %s8
      // Predicated region
      $region105: #{fused_leaky_relu.1} parent=5 // pred_check
        %p393 = pneg %p392
      $region106: #{fused_leaky_relu.1} parent=5 // pred_check_branch
        %395 = sbr.rel (%p393) target = $region108
      $region107: #{fused_leaky_relu.1} parent=5 // pred_region
        %s396 = ssub.s32 %s8, 2
        // Predicated region
        $region109: #{fused_leaky_relu.1} parent=107 // pred_check
          %p397 = pneg %p105
        $region110: #{fused_leaky_relu.1} parent=107 // pred_check_branch
          %399 = sbr.rel (%p397) target = $region112
        $region111: #{fused_leaky_relu.1} parent=107 // pred_region
          %s400 = sand.u32 %s90, 1
          %s401 = sand.u32 %s90, 1
          %s402 = smul.addr %s401, 32
          %s403 = scalar_lea.vmem [#allocation3], %s402
        $region112: #{fused_leaky_relu.1} parent=107 // pred_fallthru
          _
      $region108: #{fused_leaky_relu.1} parent=5 // pred_fallthru
        _
    $region6: #{fused_leaky_relu.1} parent=1 // loop_footer
      %s12 = sadd.s32 1, %s8
    $region7: #{fused_leaky_relu.1} parent=1 // loop_footer_branch
      %7 = sbr.rel target = $region3
    $region8: #{fused_leaky_relu.1} parent=1 // loop_exit
      _

</llo_original>
